<compile_context>
chip_gen: v6e
topology: v6e:2x2x1
jax: 0.10.0
libtpu: 0.0.40
codegen_flags: <defaults>
</compile_context>

<pallas_src>
import functools

import jax
import jax.numpy as jnp
from jax import lax
from jax.experimental import pallas as pl
from jax.experimental.pallas import tpu as pltpu


def _neg_logsoftmax_gather_sum_kernel(scores_ref, tgt_ref, len_ref, out_ref,
                                      *, batch, tile_b):
    # scores_ref: (TB, C) native dtype, tgt_ref: (TB, 1) i32, len_ref: (TB, 1) f32
    i = pl.program_id(0)

    s = scores_ref[...].astype(jnp.float32)                            # (TB, C)

    # numerically-stable logsumexp along classes (dim=1)
    m = jnp.max(s, axis=1, keepdims=True)                              # (TB, 1)
    lse = m + jnp.log(jnp.sum(jnp.exp(s - m), axis=1, keepdims=True))  # (TB, 1)

    # gather scores[r, target_ids[r]] via a select (no one-hot multiply)
    col = lax.broadcasted_iota(jnp.int32, s.shape, 1)                  # (TB, C)
    s_at_tgt = jnp.sum(jnp.where(col == tgt_ref[...], s, 0.0),
                       axis=1, keepdims=True)                          # (TB, 1)

    # -log_softmax(scores)[r, t_r] / lengths[r]
    per_row = (lse - s_at_tgt) / len_ref[...]                          # (TB, 1)

    # mask rows past the true batch size (grid / block padding)
    row = i * tile_b + lax.broadcasted_iota(jnp.int32, per_row.shape, 0)
    per_row = jnp.where(row < batch, per_row, 0.0)

    # per-tile partial sum, broadcast into a lane-dense (8, 128) output block
    partial = jnp.sum(per_row)
    out_ref[...] = jnp.zeros((8, 128), jnp.float32) + partial


def _round_up(x, m):
    return (x + m - 1) // m * m


def log_softmax_loss(scores, target_ids, lengths):
    """Pallas equivalent of the PyTorch LogSoftmax module forward."""
    B, C = scores.shape
    itemsize = jnp.dtype(scores.dtype).itemsize

    # Batch tile size: keep the double-buffered scores tile around <=12 MiB so it
    # fits the scoped-VMEM defaults on every generation (v7x has only 64 MiB phys).
    per_buf_budget = 6 * 1024 * 1024
    tb = (per_buf_budget // max(1, C * itemsize)) // 8 * 8
    tb = max(8, min(1024, tb))
    tb = min(tb, _round_up(B, 8))
    num_tiles = pl.cdiv(B, tb)

    # small per-row side inputs as (B, 1) columns, tiled with the same batch grid
    tgt = target_ids.astype(jnp.int32).reshape(B, 1)
    lens = lengths.astype(jnp.float32).reshape(B, 1)

    # TODO(synk): for vocab-scale C, add a second ("arbitrary", last) grid axis over
    # classes with an online logsumexp (flash-style scratch accumulators) so VMEM
    # holds only (tb, tc) instead of (tb, C).

    kernel = functools.partial(_neg_logsoftmax_gather_sum_kernel,
                               batch=B, tile_b=tb)

    partials = pl.pallas_call(
        kernel,
        out_shape=jax.ShapeDtypeStruct((num_tiles * 8, 128), jnp.float32),
        grid_spec=pl.GridSpec(
            grid=(num_tiles,),
            in_specs=[
                pl.BlockSpec((tb, C), lambda i: (i, 0)),   # scores, native dtype
                pl.BlockSpec((tb, 1), lambda i: (i, 0)),   # target ids
                pl.BlockSpec((tb, 1), lambda i: (i, 0)),   # lengths
            ],
            out_specs=pl.BlockSpec((8, 128), lambda i: (i, 0)),
        ),
        compiler_params=pltpu.CompilerParams(
            dimension_semantics=("parallel",),
            vmem_limit_bytes=32 * 1024 * 1024,
        ),
    )(scores, tgt, lens)

    # one partial per tile (every element of a tile's (8,128) block is identical)
    return jnp.sum(partials[::8, 0])


if __name__ == "__main__":
    key = jax.random.PRNGKey(0)
    k1, k2, k3 = jax.random.split(key, 3)

    B, C = 8, 32
    scores = jax.random.normal(k1, (B, C), dtype=jnp.float32)
    target_ids = jax.random.randint(k2, (B,), 0, C, dtype=jnp.int32)
    lengths = jax.random.uniform(k3, (B,), dtype=jnp.float32, minval=1.0, maxval=10.0)

    result = log_softmax_loss(scores, target_ids, lengths)
    jax.block_until_ready(result)

    # reference check in plain JAX
    aux = -jax.nn.log_softmax(scores, axis=1)
    ref = jnp.sum(aux[jnp.arange(B), target_ids] / lengths)
    assert jnp.allclose(result, ref, rtol=1e-5, atol=1e-5), (result, ref)

    print("KERNEL_OK")
</pallas_src>

<mosaic_0001>
module attributes {stable_mosaic.version = 11 : i64} {
  func.func @_neg_logsoftmax_gather_sum_kernel(%arg0: i32, %arg1: memref<8x32xf32, #tpu.memory_space<vmem>>, %arg2: memref<8x1xi32, #tpu.memory_space<vmem>>, %arg3: memref<8x1xf32, #tpu.memory_space<vmem>>, %arg4: memref<8x128xf32, #tpu.memory_space<vmem>>) attributes {dimension_semantics = [#tpu.dimension_semantics<parallel>], iteration_bounds = array<i64: 1>, scalar_prefetch = 0 : i64, scratch_operands = 0 : i64, tpu.core_type = #tpu.core_type<tc>, window_params = [{transform_indices = @transform_0, window_bounds = array<i64: 8, 32>}, {transform_indices = @transform_1, window_bounds = array<i64: 8, 1>}, {transform_indices = @transform_2, window_bounds = array<i64: 8, 1>}, {transform_indices = @transform_3, window_bounds = array<i64: 8, 128>}]} {
    %c0 = arith.constant 0 : index
    %c0_0 = arith.constant 0 : index
    %0 = vector.load %arg1[%c0, %c0_0] : memref<8x32xf32, #tpu.memory_space<vmem>>, vector<8x32xf32>
    %cst = arith.constant dense<0xFF800000> : vector<8xf32>
    %1 = vector.multi_reduction <maximumf>, %0, %cst [1] : vector<8x32xf32> to vector<8xf32>
    %2 = vector.shape_cast %1 : vector<8xf32> to vector<8x1xf32>
    %3 = vector.broadcast %2 : vector<8x1xf32> to vector<8x32xf32>
    %4 = arith.subf %0, %3 : vector<8x32xf32>
    %5 = math.exp %4 : vector<8x32xf32>
    %cst_1 = arith.constant dense<0.000000e+00> : vector<8xf32>
    %6 = vector.multi_reduction <add>, %5, %cst_1 [1] : vector<8x32xf32> to vector<8xf32>
    %7 = vector.shape_cast %6 : vector<8xf32> to vector<8x1xf32>
    %8 = math.log %7 : vector<8x1xf32>
    %9 = arith.addf %2, %8 : vector<8x1xf32>
    %10 = tpu.iota {dimensions = array<i32: 1>} : vector<8x32xi32>
    %c0_2 = arith.constant 0 : index
    %c0_3 = arith.constant 0 : index
    %11 = vector.load %arg2[%c0_2, %c0_3] : memref<8x1xi32, #tpu.memory_space<vmem>>, vector<8x1xi32>
    %12 = vector.broadcast %11 : vector<8x1xi32> to vector<8x32xi32>
    %13 = arith.cmpi eq, %10, %12 : vector<8x32xi32>
    %cst_4 = arith.constant 0.000000e+00 : f32
    %14 = vector.broadcast %cst_4 : f32 to vector<8x32xf32>
    %15 = arith.select %13, %0, %14 : vector<8x32xi1>, vector<8x32xf32>
    %cst_5 = arith.constant dense<0.000000e+00> : vector<8xf32>
    %16 = vector.multi_reduction <add>, %15, %cst_5 [1] : vector<8x32xf32> to vector<8xf32>
    %17 = vector.shape_cast %16 : vector<8xf32> to vector<8x1xf32>
    %18 = arith.subf %9, %17 : vector<8x1xf32>
    %c0_6 = arith.constant 0 : index
    %c0_7 = arith.constant 0 : index
    %19 = vector.load %arg3[%c0_6, %c0_7] : memref<8x1xf32, #tpu.memory_space<vmem>>, vector<8x1xf32>
    %20 = arith.divf %18, %19 : vector<8x1xf32>
    %c8_i32 = arith.constant 8 : i32
    %21 = arith.muli %arg0, %c8_i32 : i32
    %22 = tpu.iota {dimensions = array<i32: 0>} : vector<8x1xi32>
    %23 = vector.broadcast %21 : i32 to vector<8x1xi32>
    %24 = arith.addi %23, %22 : vector<8x1xi32>
    %c8_i32_8 = arith.constant 8 : i32
    %25 = vector.broadcast %c8_i32_8 : i32 to vector<8x1xi32>
    %26 = arith.cmpi slt, %24, %25 : vector<8x1xi32>
    %cst_9 = arith.constant 0.000000e+00 : f32
    %27 = vector.broadcast %cst_9 : f32 to vector<8x1xf32>
    %28 = arith.select %26, %20, %27 : vector<8x1xi1>, vector<8x1xf32>
    %29 = vector.shape_cast %28 : vector<8x1xf32> to vector<1x8x1xf32>
    %cst_10 = arith.constant dense<0.000000e+00> : vector<1xf32>
    %30 = vector.multi_reduction <add>, %29, %cst_10 [1, 2] : vector<1x8x1xf32> to vector<1xf32>
    %31 = vector.shape_cast %30 : vector<1xf32> to vector<1x1x1xf32>
    %32 = vector.extract %31[0, 0, 0] : f32 from vector<1x1x1xf32>
    %cst_11 = arith.constant 0.000000e+00 : f32
    %33 = vector.broadcast %cst_11 : f32 to vector<8x128xf32>
    %34 = vector.broadcast %32 : f32 to vector<8x128xf32>
    %35 = arith.addf %33, %34 : vector<8x128xf32>
    %c0_12 = arith.constant 0 : index
    %c0_13 = arith.constant 0 : index
    %36 = vector.load %arg4[%c0_12, %c0_13] : memref<8x128xf32, #tpu.memory_space<vmem>>, vector<8x128xf32>
    tpu.vector_store %arg4[%c0_12, %c0_13], %35 {strides = array<i32>} : memref<8x128xf32, #tpu.memory_space<vmem>>, vector<8x128xf32>,
    return
  }
  func.func @transform_0(%arg0: i32) -> (i32, i32) {
    %c0_i32 = arith.constant 0 : i32
    %c0_i32_0 = arith.constant 0 : i32
    return %arg0, %c0_i32 : i32, i32
  }
  func.func @transform_1(%arg0: i32) -> (i32, i32) {
    %c0_i32 = arith.constant 0 : i32
    %c0_i32_0 = arith.constant 0 : i32
    return %arg0, %c0_i32 : i32, i32
  }
  func.func @transform_2(%arg0: i32) -> (i32, i32) {
    %c0_i32 = arith.constant 0 : i32
    %c0_i32_0 = arith.constant 0 : i32
    return %arg0, %c0_i32 : i32, i32
  }
  func.func @transform_3(%arg0: i32) -> (i32, i32) {
    %c0_i32 = arith.constant 0 : i32
    %c0_i32_0 = arith.constant 0 : i32
    return %arg0, %c0_i32 : i32, i32
  }
}

</mosaic_0001>

<llo_original>
// kernel: tpu_custom_call.1
$region0: #{tpu_custom_call.1}
  #allocation0 [shape = 'u32[]', space=smem, size = 0x4, offset = 0x4, fixed_abs, tag = 'smem constant byte address 0x4 - core index']
  #allocation1 [shape = 'u32[144,128]{1,0:T(1,128)}', space=vmem, size = 0x12000, scoped, tag = 'internal scratch']
  %s0 = inlined_call_operand.vmem [shape: f32[8,32], index: 0, kind: input, shape index: {}]
  %s1 = inlined_call_operand.vmem [shape: s32[8,1], index: 1, kind: input, shape index: {}]
  %s2 = inlined_call_operand.vmem [shape: f32[8,1], index: 2, kind: input, shape index: {}]
  %s3 = inlined_call_operand.hbm [shape: f32[8,128], index: 3, kind: output, shape index: {}]
  %s4 = sld [smem:[#allocation0]]
  $region22: #{tpu_custom_call.1} parent=0
    _
  %s6 = ssub.s32 1, %s4
  %s7 = scalar_select 0, %s6, %s4
  $region1: #{tpu_custom_call.1} parent=0
    #allocation2 [shape = 'u8[4096]{0}', space=vmem, size = 0x1000, scoped, tag = 'output window, operand 0, single buffered']
    #allocation3 [shape = 's32[1]{0}', space=sflag, size = 0x4, scoped, tag = 'scoped memory for tpu_custom_call.1']
    %8 = vsyncpa [#allocation3], 0
    // Predicated region
    $region2: #{tpu_custom_call.1} parent=1 // pred_check
      _
    $region3: #{tpu_custom_call.1} parent=1 // pred_check_branch
      %10 = sbr.rel (0) target = $region5
    $region4: #{tpu_custom_call.1} parent=1 // pred_region
      _
    $region5: #{tpu_custom_call.1} parent=1 // pred_fallthru
      _
    // Predicated region
    $region6: #{tpu_custom_call.1} parent=1 // pred_check
      _
    $region7: #{tpu_custom_call.1} parent=1 // pred_check_branch
      %12 = sbr.rel (0) target = $region9
    $region8: #{tpu_custom_call.1} parent=1 // pred_region
      _
    $region9: #{tpu_custom_call.1} parent=1 // pred_fallthru
      _
    // Predicated region
    $region10: #{tpu_custom_call.1} parent=1 // pred_check
      _
    $region11: #{tpu_custom_call.1} parent=1 // pred_check_branch
      %14 = sbr.rel (0) target = $region13
    $region12: #{tpu_custom_call.1} parent=1 // pred_region
      _
    $region13: #{tpu_custom_call.1} parent=1 // pred_fallthru
      _
    %v15 = vld [vmem:[%s0] sm:$0xff]
    %vm16 = vcmask 261120
    %v17 = vsel %vm16, %v15, -inf
    %18 = vmax.xlane.f32.xlu0 %v17
    %v19 = vpop.xlane.xlu0 %18
    %v20 = vsub.f32 %v15, %v19
    %v21 = vmul.f32 %v20, 1.442695
    %v22 = vpow.pop %v21
    %v23 = vsel %vm16, %v22, 0.0
    %24 = vadd.xlane.f32.xlu0 %v23
    %v25 = vpop.xlane.xlu0 %24
    %v26 = vlog2.pop %v25
    %v27 = vmul.f32 %v26, 0.6931472
    %v28 = vadd.f32 %v19, %v27
    %v29 = vlaneseq
    %v30 = vand.u32 %v29, 127
    %v31 = vld [vmem:[%s1] sm:$0xff]
    %32 = vset.pattern.permute.xlu0 0
    %33 = vperm.xlu0 %32, %v31
    %v34 = vpop.permute.xlu0 %33
    %vm35 = vcmp.eq.s32.totalorder %v30, %v34
    %v36 = vsel %vm35, %v15, 0.0
    %v37 = vsel %vm16, %v36, 0.0
    %38 = vadd.xlane.f32.xlu0 %v37
    %v39 = vpop.xlane.xlu0 %38
    %v40 = vsub.f32 %v28, %v39
    %v41 = vld [vmem:[%s2] sm:$0xff]
    %v42 = vrcp.pop %v41
    %v43 = vmul.f32 %v40, %v42
    %s44 = smul.u32 0, 8
    %v45 = vlaneseq
    %v46 = vshrl.u32 %v45, 7
    %v47 = vstv %s44
    %v48 = vadd.s32 %v47, %v46
    %vm49 = vcmp.lt.s32.totalorder %v48, 8
    %v50 = vsel %vm49, %v43, 0.0
    %vm51 = vcmask 7168
    %v52 = vsel %vm51, %v50, 0.0
    %53 = vadd.xlane.f32.xlu0 %v52
    %v54 = vpop.xlane.xlu0 %53
    %v55 = vrot.slane %v54, 4
    %v56 = vadd.f32 %v54, %v55
    %v57 = vrot.slane %v56, 2
    %v58 = vadd.f32 %v56, %v57
    %v59 = vrot.slane %v58, 1
    %v60 = vadd.f32 %v58, %v59
    %s61 = vtos %v60
    %v62 = vstv %s61
    %v63 = vadd.f32 %v62, 0.0
    %64 = vst [vmem:[#allocation2] sm:$0xff] %v63
    // Predicated region
    $region14: #{tpu_custom_call.1} parent=1 // pred_check
      _
    $region15: #{tpu_custom_call.1} parent=1 // pred_check_branch
      %66 = sbr.rel (0) target = $region17
    $region16: #{tpu_custom_call.1} parent=1 // pred_region
      %s68 = ssub.s32 128, 128
      %69 = vsyncadd [#allocation3], %s68
      %s71 = sshll.u32 [#allocation2], 4
      %s72 = int_to_ptr.vmem [resolvable:$true] %s71
      %74 = dma.vmem_to_hbm [thread:$0]  %s72, 128, %s3, [#allocation3]
    $region17: #{tpu_custom_call.1} parent=1 // pred_fallthru
      _
    // Predicated region
    $region18: #{tpu_custom_call.1} parent=1 // pred_check
      _
    $region19: #{tpu_custom_call.1} parent=1 // pred_check_branch
      %76 = sbr.rel (0) target = $region21
    $region20: #{tpu_custom_call.1} parent=1 // pred_region
      %77 = dma.done [#allocation3], 128
    $region21: #{tpu_custom_call.1} parent=1 // pred_fallthru
      _
    %78 = vsyncpa [#allocation3], 1

</llo_original>
